<compile_context>
chip_gen: v7x
topology: tpu7x:2x2x1
jax: 0.10.0
libtpu: 0.0.40
codegen_flags: <defaults>
</compile_context>

<pallas_src>
import functools

import jax
import jax.numpy as jnp
from jax.experimental import pallas as pl
from jax.experimental.pallas import tpu as pltpu

_LANE = 128          # vreg lane width
_BF16_SUBLANE = 16   # bf16 packs [16, 128] per vreg


def _round_up(n: int, m: int) -> int:
    return ((n + m - 1) // m) * m


def qnetwork_kernel(x_ref, w1_ref, b1_ref, w2_ref, b2_ref, w3_ref, b3_ref, o_ref):
    # fc1 + relu  (bf16 MXU operands, f32 accumulate; VPU bias-add + relu)
    h1 = jnp.dot(x_ref[...], w1_ref[...], preferred_element_type=jnp.float32)
    h1 = jnp.maximum(h1 + b1_ref[...], 0.0)
    # fc2 + relu
    h2 = jnp.dot(h1.astype(jnp.bfloat16), w2_ref[...],
                 preferred_element_type=jnp.float32)
    h2 = jnp.maximum(h2 + b2_ref[...], 0.0)
    # fc3 (no activation); bf16 store halves the output HBM stream.
    out = jnp.dot(h2.astype(jnp.bfloat16), w3_ref[...],
                  preferred_element_type=jnp.float32)
    o_ref[...] = (out + b3_ref[...]).astype(o_ref.dtype)


def prepare_params(params):
    """One-time (per weight update) prep: pad feature dims to the 128-lane width
    and cast MXU operands to bf16. Reuse the result across forward calls."""
    in_dim, hidden = params["w1"].shape
    out_dim = params["w3"].shape[1]
    in_pad = _round_up(in_dim, _LANE)
    out_pad = _round_up(out_dim, _LANE)
    bf16, f32 = jnp.bfloat16, jnp.float32

    w1 = jnp.zeros((in_pad, hidden), bf16).at[:in_dim, :].set(params["w1"].astype(bf16))
    w2 = params["w2"].astype(bf16)
    w3 = jnp.zeros((hidden, out_pad), bf16).at[:, :out_dim].set(params["w3"].astype(bf16))
    b1 = params["b1"].astype(f32).reshape(1, hidden)
    b2 = params["b2"].astype(f32).reshape(1, hidden)
    b3 = jnp.zeros((1, out_pad), f32).at[:, :out_dim].set(
        params["b3"].astype(f32).reshape(1, out_dim))
    return {"w1": w1, "b1": b1, "w2": w2, "b2": b2, "w3": w3, "b3": b3}


def _choose_batch_tiling(B: int, max_tile: int):
    """Ragged-aware batch tiling, rounded to the bf16 sublane pack (16).
    Forces >= 2 grid steps for mid/large batches so the parallel batch axis can
    shard across both TensorCores on v7x (single step for tiny batches)."""
    min_tiles = 2 if B >= 128 else 1
    num_tiles = max(min_tiles, pl.cdiv(B, max_tile))
    tb = _round_up(pl.cdiv(B, num_tiles), _BF16_SUBLANE)
    return tb, tb * num_tiles, num_tiles


def qnetwork_forward(x, prepared, *, out_dim: int, max_batch_tile: int = 1024):
    """x: [B, input_dim] float32. prepared: output of prepare_params().

    Returns [B, out_dim] float32 (matches PyTorch x @ W.T + b semantics)."""
    B, in_dim = x.shape
    in_pad, hidden = prepared["w1"].shape
    out_pad = prepared["w3"].shape[1]

    tb, b_pad, num_tiles = _choose_batch_tiling(B, max_batch_tile)

    # Pad batch/feature dims and cast to bf16. With allow_input_fusion on this
    # operand, XLA may fuse the pad/cast into the pallas_call input DMA instead
    # of materializing a separate padded HBM copy.
    x_p = jnp.zeros((b_pad, in_pad), jnp.bfloat16).at[:B, :in_dim].set(
        x.astype(jnp.bfloat16))

    grid = (num_tiles,)

    # Activations tiled over the batch grid; weights/biases resident in VMEM
    # (constant index_map) across grid steps.
    x_spec = pl.BlockSpec((tb, in_pad), lambda i: (i, 0))
    w1_spec = pl.BlockSpec((in_pad, hidden), lambda i: (0, 0))
    b1_spec = pl.BlockSpec((1, hidden), lambda i: (0, 0))
    w2_spec = pl.BlockSpec((hidden, hidden), lambda i: (0, 0))
    b2_spec = pl.BlockSpec((1, hidden), lambda i: (0, 0))
    w3_spec = pl.BlockSpec((hidden, out_pad), lambda i: (0, 0))
    b3_spec = pl.BlockSpec((1, out_pad), lambda i: (0, 0))
    out_spec = pl.BlockSpec((tb, out_pad), lambda i: (i, 0))

    flops = 2 * b_pad * (in_pad * hidden + hidden * hidden + hidden * out_pad)
    bytes_accessed = (
        b_pad * in_pad * 2                                          # bf16 input
        + (in_pad * hidden + hidden * hidden + hidden * out_pad) * 2  # bf16 weights
        + (2 * hidden + out_pad) * 4                                 # f32 biases
        + b_pad * out_pad * 2                                        # bf16 output
    )

    out_padded = pl.pallas_call(
        qnetwork_kernel,
        out_shape=jax.ShapeDtypeStruct((b_pad, out_pad), jnp.bfloat16),
        grid_spec=pltpu.PrefetchScalarGridSpec(
            num_scalar_prefetch=0,
            grid=grid,
            in_specs=[x_spec, w1_spec, b1_spec, w2_spec, b2_spec, w3_spec, b3_spec],
            out_specs=out_spec,
        ),
        compiler_params=pltpu.CompilerParams(
            dimension_semantics=("parallel",),
            allow_input_fusion=[True, False, False, False, False, False, False],
        ),
        cost_estimate=pl.CostEstimate(
            flops=flops, transcendentals=0, bytes_accessed=bytes_accessed
        ),
    )(x_p, prepared["w1"], prepared["b1"], prepared["w2"], prepared["b2"],
      prepared["w3"], prepared["b3"])

    # Slice off padding; return f32 to match the PyTorch module's output dtype.
    return out_padded[:B, :out_dim].astype(jnp.float32)


def init_params(key, input_dim, output_dim, hidden=256):
    """Deterministic init mimicking PyTorch nn.Linear default (uniform +/- 1/sqrt(fan_in)).
    Weights are stored already transposed: [in_features, out_features]."""
    keys = jax.random.split(key, 6)

    def linear(kw, kb, fan_in, fan_out):
        bound = 1.0 / jnp.sqrt(float(fan_in))
        w = jax.random.uniform(kw, (fan_in, fan_out), jnp.float32, -bound, bound)
        b = jax.random.uniform(kb, (1, fan_out), jnp.float32, -bound, bound)
        return w, b

    w1, b1 = linear(keys[0], keys[1], input_dim, hidden)
    w2, b2 = linear(keys[2], keys[3], hidden, hidden)
    w3, b3 = linear(keys[4], keys[5], hidden, output_dim)
    return {"w1": w1, "b1": b1, "w2": w2, "b2": b2, "w3": w3, "b3": b3}


def reference_forward(x, params):
    h1 = jnp.maximum(x @ params["w1"] + params["b1"], 0.0)
    h2 = jnp.maximum(h1 @ params["w2"] + params["b2"], 0.0)
    return h2 @ params["w3"] + params["b3"]


if __name__ == "__main__":
    key = jax.random.PRNGKey(0)
    k_x, k_p = jax.random.split(key)

    batch = 2
    input_dim = 32     # e.g. a small state vector
    output_dim = 8     # e.g. number of discrete actions

    x = jax.random.normal(k_x, (batch, input_dim), dtype=jnp.float32)
    params = init_params(k_p, input_dim, output_dim)

    # One-time weight prep (re-run only when the weights change).
    prepared = prepare_params(params)

    fwd = jax.jit(functools.partial(qnetwork_forward, out_dim=output_dim))
    out = jax.block_until_ready(fwd(x, prepared))

    ref = reference_forward(x, params)
    assert out.shape == (batch, output_dim)
    # bf16 MXU operands + bf16 output store with f32 accumulation -> looser tol.
    assert jnp.allclose(out, ref, atol=5e-2, rtol=5e-2), (
        f"max abs err {jnp.max(jnp.abs(out - ref))}"
    )

    print("KERNEL_OK")
</pallas_src>

<mosaic_0001>
module attributes {stable_mosaic.version = 11 : i64} {
  func.func @qnetwork_kernel(%arg0: i32, %arg1: memref<16x128xbf16, #tpu.memory_space<vmem>>, %arg2: memref<128x256xbf16, #tpu.memory_space<vmem>>, %arg3: memref<1x256xf32, #tpu.memory_space<vmem>>, %arg4: memref<256x256xbf16, #tpu.memory_space<vmem>>, %arg5: memref<1x256xf32, #tpu.memory_space<vmem>>, %arg6: memref<256x128xbf16, #tpu.memory_space<vmem>>, %arg7: memref<1x128xf32, #tpu.memory_space<vmem>>, %arg8: memref<16x128xbf16, #tpu.memory_space<vmem>>) attributes {dimension_semantics = [#tpu.dimension_semantics<parallel>], iteration_bounds = array<i64: 1>, scalar_prefetch = 0 : i64, scratch_operands = 0 : i64, tpu.core_type = #tpu.core_type<tc>, window_params = [{transform_indices = @transform_0, window_bounds = array<i64: 16, 128>}, {pipeline_mode = #tpu.pipeline_mode<synchronous>, transform_indices = @transform_1, window_bounds = array<i64: 128, 256>}, {pipeline_mode = #tpu.pipeline_mode<synchronous>, transform_indices = @transform_2, window_bounds = array<i64: 1, 256>}, {pipeline_mode = #tpu.pipeline_mode<synchronous>, transform_indices = @transform_3, window_bounds = array<i64: 256, 256>}, {pipeline_mode = #tpu.pipeline_mode<synchronous>, transform_indices = @transform_4, window_bounds = array<i64: 1, 256>}, {pipeline_mode = #tpu.pipeline_mode<synchronous>, transform_indices = @transform_5, window_bounds = array<i64: 256, 128>}, {pipeline_mode = #tpu.pipeline_mode<synchronous>, transform_indices = @transform_6, window_bounds = array<i64: 1, 128>}, {transform_indices = @transform_7, window_bounds = array<i64: 16, 128>}]} {
    %c0 = arith.constant 0 : index
    %c0_0 = arith.constant 0 : index
    %0 = vector.load %arg1[%c0, %c0_0] : memref<16x128xbf16, #tpu.memory_space<vmem>>, vector<16x128xbf16>
    %c0_1 = arith.constant 0 : index
    %c0_2 = arith.constant 0 : index
    %1 = vector.load %arg2[%c0_1, %c0_2] : memref<128x256xbf16, #tpu.memory_space<vmem>>, vector<128x256xbf16>
    %cst = arith.constant dense<0.000000e+00> : vector<16x256xf32>
    %2 = tpu.matmul %0, %1, %cst {dimension_numbers = #tpu.dot_dimension_numbers<[1], [0], [0], [1], [0, 0, 1, 1], [], []>} : vector<16x128xbf16>, vector<128x256xbf16>, vector<16x256xf32> -> vector<16x256xf32>
    %c0_3 = arith.constant 0 : index
    %c0_4 = arith.constant 0 : index
    %3 = vector.load %arg3[%c0_3, %c0_4] : memref<1x256xf32, #tpu.memory_space<vmem>>, vector<1x256xf32>
    %4 = vector.broadcast %3 : vector<1x256xf32> to vector<16x256xf32>
    %5 = arith.addf %2, %4 : vector<16x256xf32>
    %cst_5 = arith.constant 0.000000e+00 : f32
    %6 = vector.broadcast %cst_5 : f32 to vector<16x256xf32>
    %7 = arith.maximumf %5, %6 : vector<16x256xf32>
    %8 = arith.truncf %7 : vector<16x256xf32> to vector<16x256xbf16>
    %c0_6 = arith.constant 0 : index
    %c0_7 = arith.constant 0 : index
    %9 = vector.load %arg4[%c0_6, %c0_7] : memref<256x256xbf16, #tpu.memory_space<vmem>>, vector<256x256xbf16>
    %cst_8 = arith.constant dense<0.000000e+00> : vector<16x256xf32>
    %10 = tpu.matmul %8, %9, %cst_8 {dimension_numbers = #tpu.dot_dimension_numbers<[1], [0], [0], [1], [0, 0, 1, 1], [], []>} : vector<16x256xbf16>, vector<256x256xbf16>, vector<16x256xf32> -> vector<16x256xf32>
    %c0_9 = arith.constant 0 : index
    %c0_10 = arith.constant 0 : index
    %11 = vector.load %arg5[%c0_9, %c0_10] : memref<1x256xf32, #tpu.memory_space<vmem>>, vector<1x256xf32>
    %12 = vector.broadcast %11 : vector<1x256xf32> to vector<16x256xf32>
    %13 = arith.addf %10, %12 : vector<16x256xf32>
    %cst_11 = arith.constant 0.000000e+00 : f32
    %14 = vector.broadcast %cst_11 : f32 to vector<16x256xf32>
    %15 = arith.maximumf %13, %14 : vector<16x256xf32>
    %16 = arith.truncf %15 : vector<16x256xf32> to vector<16x256xbf16>
    %c0_12 = arith.constant 0 : index
    %c0_13 = arith.constant 0 : index
    %17 = vector.load %arg6[%c0_12, %c0_13] : memref<256x128xbf16, #tpu.memory_space<vmem>>, vector<256x128xbf16>
    %cst_14 = arith.constant dense<0.000000e+00> : vector<16x128xf32>
    %18 = tpu.matmul %16, %17, %cst_14 {dimension_numbers = #tpu.dot_dimension_numbers<[1], [0], [0], [1], [0, 0, 1, 1], [], []>} : vector<16x256xbf16>, vector<256x128xbf16>, vector<16x128xf32> -> vector<16x128xf32>
    %c0_15 = arith.constant 0 : index
    %c0_16 = arith.constant 0 : index
    %19 = vector.load %arg7[%c0_15, %c0_16] : memref<1x128xf32, #tpu.memory_space<vmem>>, vector<1x128xf32>
    %20 = vector.broadcast %19 : vector<1x128xf32> to vector<16x128xf32>
    %21 = arith.addf %18, %20 : vector<16x128xf32>
    %22 = arith.truncf %21 : vector<16x128xf32> to vector<16x128xbf16>
    %c0_17 = arith.constant 0 : index
    %c0_18 = arith.constant 0 : index
    %23 = vector.load %arg8[%c0_17, %c0_18] : memref<16x128xbf16, #tpu.memory_space<vmem>>, vector<16x128xbf16>
    tpu.vector_store %arg8[%c0_17, %c0_18], %22 {strides = array<i32>} : memref<16x128xbf16, #tpu.memory_space<vmem>>, vector<16x128xbf16>,
    return
  }
  func.func @transform_0(%arg0: i32) -> (i32, i32) {
    %c0_i32 = arith.constant 0 : i32
    %c0_i32_0 = arith.constant 0 : i32
    return %arg0, %c0_i32 : i32, i32
  }
  func.func @transform_1(%arg0: i32) -> (i32, i32) {
    %c0_i32 = arith.constant 0 : i32
    %c0_i32_0 = arith.constant 0 : i32
    %c0_i32_1 = arith.constant 0 : i32
    return %c0_i32, %c0_i32_0 : i32, i32
  }
  func.func @transform_2(%arg0: i32) -> (i32, i32) {
    %c0_i32 = arith.constant 0 : i32
    %c0_i32_0 = arith.constant 0 : i32
    %c0_i32_1 = arith.constant 0 : i32
    return %c0_i32, %c0_i32_0 : i32, i32
  }
  func.func @transform_3(%arg0: i32) -> (i32, i32) {
    %c0_i32 = arith.constant 0 : i32
    %c0_i32_0 = arith.constant 0 : i32
    %c0_i32_1 = arith.constant 0 : i32
    return %c0_i32, %c0_i32_0 : i32, i32
  }
  func.func @transform_4(%arg0: i32) -> (i32, i32) {
    %c0_i32 = arith.constant 0 : i32
    %c0_i32_0 = arith.constant 0 : i32
    %c0_i32_1 = arith.constant 0 : i32
    return %c0_i32, %c0_i32_0 : i32, i32
  }
  func.func @transform_5(%arg0: i32) -> (i32, i32) {
    %c0_i32 = arith.constant 0 : i32
    %c0_i32_0 = arith.constant 0 : i32
    %c0_i32_1 = arith.constant 0 : i32
    return %c0_i32, %c0_i32_0 : i32, i32
  }
  func.func @transform_6(%arg0: i32) -> (i32, i32) {
    %c0_i32 = arith.constant 0 : i32
    %c0_i32_0 = arith.constant 0 : i32
    %c0_i32_1 = arith.constant 0 : i32
    return %c0_i32, %c0_i32_0 : i32, i32
  }
  func.func @transform_7(%arg0: i32) -> (i32, i32) {
    %c0_i32 = arith.constant 0 : i32
    %c0_i32_0 = arith.constant 0 : i32
    return %arg0, %c0_i32 : i32, i32
  }
}

</mosaic_0001>

<llo_original>
// kernel: qnetwork_forward.2
$region0: #{qnetwork_forward.2}
  #allocation0 [shape = 'u32[]', space=smem, size = 0x4, offset = 0x4, fixed_abs, tag = 'smem constant byte address 0x4 - core index']
  #allocation1 [shape = 'u32[144,128]{1,0:T(1,128)}', space=vmem, size = 0x12000, scoped, tag = 'internal scratch']
  #allocation2 [shape = 'u32[2048]{0}', space=vmem, size = 0x2000, scoped, tag = 'scoped memory for qnetwork_forward.2']
  #allocation3 [shape = 'u32[2048]{0}', space=vmem, size = 0x2000, scoped, tag = 'scoped memory for qnetwork_forward.2']
  #allocation4 [shape = 'u32[2048]{0}', space=vmem, size = 0x2000, scoped, tag = 'scoped memory for qnetwork_forward.2']
  #allocation5 [shape = 'u32[2048]{0}', space=vmem, size = 0x2000, scoped, tag = 'scoped memory for qnetwork_forward.2']
  #allocation6 [shape = 'u32[2048]{0}', space=vmem, size = 0x2000, scoped, tag = 'scoped memory for qnetwork_forward.2']
  %s0 = inlined_call_operand.hbm [shape: bf16[128,256], index: 0, kind: input, shape index: {}]
  %s1 = inlined_call_operand.vmem [shape: f32[1,256], index: 1, kind: input, shape index: {}]
  %s2 = inlined_call_operand.hbm [shape: bf16[256,256], index: 2, kind: input, shape index: {}]
  %s3 = inlined_call_operand.vmem [shape: f32[1,256], index: 3, kind: input, shape index: {}]
  %s4 = inlined_call_operand.hbm [shape: bf16[256,128], index: 4, kind: input, shape index: {}]
  %s5 = inlined_call_operand.vmem [shape: f32[1,128], index: 5, kind: input, shape index: {}]
  %s6 = inlined_call_operand.vmem [shape: bf16[2,32], index: 6, kind: input, shape index: {}]
  %s7 = inlined_call_operand.<no memory space> [shape: bf16[], index: 7, kind: input, shape index: {}]
  %s8 = inlined_call_operand.vmem [shape: bf16[16,128], index: 8, kind: output, shape index: {}]
  %s9 = sld [smem:[#allocation0]]
  $region50: #{qnetwork_forward.2} parent=0
    _
  %s11 = ssub.s32 1, %s9
  %s12 = scalar_select 0, %s11, %s9
  %v13 = vstv %s7
  %v14 = vunpack.i.l.bf16 %v13
  %v16 = vunpack.i.h.bf16 %v13
  $region1: #{qnetwork_forward.2} parent=0
    #allocation7 [shape = 'u8[65536]{0}', space=vmem, size = 0x10000, scoped, tag = 'input window, operand 1, single buffered']
    #allocation8 [shape = 's32[1]{0}', space=sflag, size = 0x4, scoped, tag = 'scoped memory for qnetwork_forward.2']
    #allocation9 [shape = 'u8[131072]{0}', space=vmem, size = 0x20000, scoped, tag = 'input window, operand 3, single buffered']
    #allocation10 [shape = 's32[1]{0}', space=sflag, size = 0x4, scoped, tag = 'scoped memory for qnetwork_forward.2']
    #allocation11 [shape = 'u8[65536]{0}', space=vmem, size = 0x10000, scoped, tag = 'input window, operand 5, single buffered']
    #allocation12 [shape = 'u8[4096]{0}', space=vmem, size = 0x1000, dematerialized = true, scoped, tag = 'FusionAdapter Buffer %fusion.1 = bf16[16,128]{1,0:T(8,128)(2,1)} fusion(%param_6.1, %param_7), kind=kLoop, calls=%fused_computation.1.clone, metadata={op_name="jit(qnetwork_forward)/scatter" stack_frame_id=7}']
    %18 = vsyncpa [#allocation8], 0
    %19 = vsyncpa [#allocation10], 0
    // Predicated region
    $region2: #{qnetwork_forward.2} parent=1 // pred_check
      _
    $region3: #{qnetwork_forward.2} parent=1 // pred_check_branch
      %21 = sbr.rel (0) target = $region5
    $region4: #{qnetwork_forward.2} parent=1 // pred_region
      _
    $region5: #{qnetwork_forward.2} parent=1 // pred_fallthru
      _
    // Predicated region
    $region6: #{qnetwork_forward.2} parent=1 // pred_check
      _
    $region7: #{qnetwork_forward.2} parent=1 // pred_check_branch
      %23 = sbr.rel (0) target = $region9
    $region8: #{qnetwork_forward.2} parent=1 // pred_region
      %s25 = ssub.s32 2048, 2048
      %26 = vsyncadd [#allocation8], %s25
      %s27 = sshll.u32 [#allocation7], 4
      %s28 = int_to_ptr.vmem [resolvable:$true] %s27
      %33 = dma.hbm_to_vmem [thread:$0]  %s0, 2048, %s28, [#allocation8], 128, 128, 8
    $region9: #{qnetwork_forward.2} parent=1 // pred_fallthru
      _
    // Predicated region
    $region10: #{qnetwork_forward.2} parent=1 // pred_check
      _
    $region11: #{qnetwork_forward.2} parent=1 // pred_check_branch
      %35 = sbr.rel (0) target = $region13
    $region12: #{qnetwork_forward.2} parent=1 // pred_region
      _
    $region13: #{qnetwork_forward.2} parent=1 // pred_fallthru
      _
    // Predicated region
    $region14: #{qnetwork_forward.2} parent=1 // pred_check
      _
    $region15: #{qnetwork_forward.2} parent=1 // pred_check_branch
      %37 = sbr.rel (0) target = $region17
    $region16: #{qnetwork_forward.2} parent=1 // pred_region
      %s39 = ssub.s32 4096, 4096
      %40 = vsyncadd [#allocation10], %s39
      %s41 = sshll.u32 [#allocation9], 4
      %s42 = int_to_ptr.vmem [resolvable:$true] %s41
      %47 = dma.hbm_to_vmem [thread:$0]  %s2, 4096, %s42, [#allocation10], 128, 128, 8
    $region17: #{qnetwork_forward.2} parent=1 // pred_fallthru
      _
    // Predicated region
    $region18: #{qnetwork_forward.2} parent=1 // pred_check
      _
    $region19: #{qnetwork_forward.2} parent=1 // pred_check_branch
      %49 = sbr.rel (0) target = $region21
    $region20: #{qnetwork_forward.2} parent=1 // pred_region
      _
    $region21: #{qnetwork_forward.2} parent=1 // pred_fallthru
      _
    // Predicated region
    $region22: #{qnetwork_forward.2} parent=1 // pred_check
      _
    $region23: #{qnetwork_forward.2} parent=1 // pred_check_branch
      %51 = sbr.rel (0) target = $region25
    $region24: #{qnetwork_forward.2} parent=1 // pred_region
      %s53 = ssub.s32 2048, 2048
      %54 = vsyncadd [#allocation10], %s53
      %s55 = sshll.u32 [#allocation11], 4
      %s56 = int_to_ptr.vmem [resolvable:$true] %s55
      %61 = dma.hbm_to_vmem [thread:$0]  %s4, 2048, %s56, [#allocation10], 64, 64, 4
    $region25: #{qnetwork_forward.2} parent=1 // pred_fallthru
      _
    // Predicated region
    $region26: #{qnetwork_forward.2} parent=1 // pred_check
      _
    $region27: #{qnetwork_forward.2} parent=1 // pred_check_branch
      %63 = sbr.rel (0) target = $region29
    $region28: #{qnetwork_forward.2} parent=1 // pred_region
      _
    $region29: #{qnetwork_forward.2} parent=1 // pred_fallthru
      _
    // Predicated region
    $region30: #{qnetwork_forward.2} parent=1 // pred_check
      _
    $region31: #{qnetwork_forward.2} parent=1 // pred_check_branch
      %65 = sbr.rel (0) target = $region33
    $region32: #{qnetwork_forward.2} parent=1 // pred_region
      %66 = dma.done [#allocation8], 2048
    $region33: #{qnetwork_forward.2} parent=1 // pred_fallthru
      _
    // Predicated region
    $region34: #{qnetwork_forward.2} parent=1 // pred_check
      _
    $region35: #{qnetwork_forward.2} parent=1 // pred_check_branch
      %68 = sbr.rel (0) target = $region37
    $region36: #{qnetwork_forward.2} parent=1 // pred_region
      %69 = dma.done [#allocation10], 4096
    $region37: #{qnetwork_forward.2} parent=1 // pred_fallthru
      _
    // Predicated region
    $region38: #{qnetwork_forward.2} parent=1 // pred_check
      _
    $region39: #{qnetwork_forward.2} parent=1 // pred_check_branch
      %71 = sbr.rel (0) target = $region41
    $region40: #{qnetwork_forward.2} parent=1 // pred_region
      %72 = dma.done [#allocation10], 2048
    $region41: #{qnetwork_forward.2} parent=1 // pred_fallthru
      _
    %s74 = sor.u32 3, 1
    %s75 = sand.u32 %s74, 1
    %v76 = vld [vmem:[%s6] sm:%s75]
    %v77 = vunpack.c.l.bf16 %v76
    %v78 = vunpack.c.h.bf16 %v76
    %v79 = vlaneseq
    %v80 = vshrl.u32 %v79, 7
    %vm82 = vcmp.lt.s32.totalorder %v80, 2
    %v83 = vsel %vm82, %v77, %v14
    %v84 = vlaneseq
    %v85 = vand.u32 %v84, 127
    %vm87 = vcmp.lt.s32.totalorder %v85, 32
    %v88 = vsel %vm87, %v83, %v14
    %v89 = vpack.c.bf16 0.0, %v88
    %91 = vst [vmem:[#allocation12] sm:$0xf] %v89
    %s92 = scalar_lea.vmem [#allocation12], 4
    %v93 = vpack.c.bf16 0.0, %v14
    %95 = vst [vmem:[%s92] sm:$0xf] %v93
    %v97 = vld [vmem:[#allocation12] sm:$0xf]
    %v98 = vld [vmem:[#allocation12 + $0x4] sm:$0xf]
    %v99 = vld [vmem:[#allocation7] sm:$0xff]
    %v100 = vld [vmem:[#allocation7 + $0x8] sm:$0xff]
    %v101 = vld [vmem:[#allocation7 + $0x10] sm:$0xff]
    %v102 = vld [vmem:[#allocation7 + $0x18] sm:$0xff]
    %v103 = vld [vmem:[#allocation7 + $0x20] sm:$0xff]
    %v104 = vld [vmem:[#allocation7 + $0x28] sm:$0xff]
    %v105 = vld [vmem:[#allocation7 + $0x30] sm:$0xff]
    %v106 = vld [vmem:[#allocation7 + $0x38] sm:$0xff]
    %v107 = vld [vmem:[#allocation7 + $0x40] sm:$0xff]
    %v108 = vld [vmem:[#allocation7 + $0x48] sm:$0xff]
    %v109 = vld [vmem:[#allocation7 + $0x50] sm:$0xff]
    %v110 = vld [vmem:[#allocation7 + $0x58] sm:$0xff]
    %v111 = vld [vmem:[#allocation7 + $0x60] sm:$0xff]
    %v112 = vld [vmem:[#allocation7 + $0x68] sm:$0xff]
    %v113 = vld [vmem:[#allocation7 + $0x70] sm:$0xff]
    %v114 = vld [vmem:[#allocation7 + $0x78] sm:$0xff]
    %v115 = vld [vmem:[%s1] sm:$0x3]
    %v117 = vlaneseq
    %v118 = vshrl.u32 %v117, 7
    %v119 = vsub.s32 0, %v118
    %v120 = vrot.slane %v115, %v119
    %v121 = vlaneseq
    %v122 = vshrl.u32 %v121, 7
    %v123 = vsub.s32 1, %v122
    %v124 = vrot.slane %v115, %v123
    %v129 = vunpack.c.l.b16 %v97
    %v130 = vunpack.c.l.b16 %v98
    %v131 = vpack.c.b16 %v130, %v129
    %v149 = vunpack.c.l.b16 %v99
    %v150 = vunpack.c.h.b16 %v99
    %v151 = vunpack.c.l.b16 %v100
    %v152 = vunpack.c.h.b16 %v100
    %v153 = vunpack.c.l.b16 %v101
    %v154 = vunpack.c.h.b16 %v101
    %v155 = vunpack.c.l.b16 %v102
    %v156 = vunpack.c.h.b16 %v102
    %v157 = vunpack.c.l.b16 %v103
    %v158 = vunpack.c.h.b16 %v103
    %v159 = vunpack.c.l.b16 %v104
    %v160 = vunpack.c.h.b16 %v104
    %v161 = vunpack.c.l.b16 %v105
    %v162 = vunpack.c.h.b16 %v105
    %v163 = vunpack.c.l.b16 %v106
    %v164 = vunpack.c.h.b16 %v106
    %v165 = vunpack.c.l.b16 %v107
    %v166 = vunpack.c.h.b16 %v107
    %v167 = vunpack.c.l.b16 %v108
    %v168 = vunpack.c.h.b16 %v108
    %v169 = vunpack.c.l.b16 %v109
    %v170 = vunpack.c.h.b16 %v109
    %v171 = vunpack.c.l.b16 %v110
    %v172 = vunpack.c.h.b16 %v110
    %v173 = vunpack.c.l.b16 %v111
    %v174 = vunpack.c.h.b16 %v111
    %v175 = vunpack.c.l.b16 %v112
    %v176 = vunpack.c.h.b16 %v112
    %v177 = vunpack.c.l.b16 %v113
    %v178 = vunpack.c.h.b16 %v113
    %v179 = vunpack.c.l.b16 %v114
    %v180 = vunpack.c.h.b16 %v114
    %v181 = vpack.c.b16 %v151, %v149
    %v182 = vpack.c.b16 %v152, %v150
    %v183 = vpack.c.b16 %v155, %v153
    %v184 = vpack.c.b16 %v156, %v154
    %v185 = vpack.c.b16 %v159, %v157
    %v186 = vpack.c.b16 %v160, %v158
    %v187 = vpack.c.b16 %v163, %v161
    %v188 = vpack.c.b16 %v164, %v162
    %v189 = vpack.c.b16 %v167, %v165
    %v190 = vpack.c.b16 %v168, %v166
    %v191 = vpack.c.b16 %v171, %v169
    %v192 = vpack.c.b16 %v172, %v170
    %v193 = vpack.c.b16 %v175, %v173
    %v194 = vpack.c.b16 %v176, %v174
    %v195 = vpack.c.b16 %v179, %v177
    %v196 = vpack.c.b16 %v180, %v178
    %213 = vmatprep.subr.bf16.mxu0 %v182
    %214 = vmatpush1.bf16.msra.mxu0 %v181
    %215 = vmatprep.subr.bf16.mxu0 %v184
    %216 = vmatpush1.bf16.msra.mxu0 %v183
    %217 = vmatprep.subr.bf16.mxu0 %v186
    %218 = vmatpush1.bf16.msra.mxu0 %v185
    %219 = vmatprep.subr.bf16.mxu0 %v188
    %220 = vmatpush1.bf16.msra.mxu0 %v187
    %221 = vmatprep.subr.bf16.mxu0 %v190
    %222 = vmatpush1.bf16.msra.mxu0 %v189
    %223 = vmatprep.subr.bf16.mxu0 %v192
    %224 = vmatpush1.bf16.msra.mxu0 %v191
    %225 = vmatprep.subr.bf16.mxu0 %v194
    %226 = vmatpush1.bf16.msra.mxu0 %v193
    %227 = vmatprep.subr.bf16.mxu0 %v196
    %228 = vmatpush1.bf16.msra.mxu0 %v195
    %229 = vmatprep.subr.bf16.mxu0 0
    %230 = vmatpush1.bf16.msra.mxu0 0
    %231 = vmatprep.subr.bf16.mxu0 0
    %232 = vmatpush1.bf16.msra.mxu0 0
    %233 = vmatprep.subr.bf16.mxu0 0
    %234 = vmatpush1.bf16.msra.mxu0 0
    %235 = vmatprep.subr.bf16.mxu0 0
    %236 = vmatpush1.bf16.msra.mxu0 0
    %237 = vmatprep.subr.bf16.mxu0 0
    %238 = vmatpush1.bf16.msra.mxu0 0
    %239 = vmatprep.subr.bf16.mxu0 0
    %240 = vmatpush1.bf16.msra.mxu0 0
    %241 = vmatprep.subr.bf16.mxu0 0
    %242 = vmatpush1.bf16.msra.mxu0 0
    %243 = vmatprep.subr.bf16.mxu0 0
    %244 = vmatpush1.bf16.msra.mxu0 0
    %245 = vmatprep.mubr.bf16.mxu0 0
    %246 = vmatmul.mubr.bf16.gmra.mrb[0].mxu0 %v131
    %v247 = vpop.f32.mrb[0].mxu0
    %v248 = vadd.f32 %v120, %v247
    %v249 = vpop.f32.mrb[0].mxu0
    %v250 = vadd.f32 %v124, %v249
    %v251 = vpop.f32.mrb[0].mxu0
    %v252 = vadd.f32 %v120, %v251
    %v253 = vpop.f32.mrb[0].mxu0
    %v254 = vadd.f32 %v124, %v253
    %255 = vdwg.mxu0
    %v256 = vmax.f32 %v248, 0.0
    %v257 = vmax.f32 %v250, 0.0
    %v258 = vmax.f32 %v252, 0.0
    %v259 = vmax.f32 %v254, 0.0
    %v260 = vpack.c.bf16 %v258, %v256
    %v261 = vpack.c.bf16 %v259, %v257
    %v262 = vld [vmem:[#allocation9] sm:$0xff]
    %v263 = vld [vmem:[#allocation9 + $0x8] sm:$0xff]
    %v264 = vld [vmem:[#allocation9 + $0x10] sm:$0xff]
    %v265 = vld [vmem:[#allocation9 + $0x18] sm:$0xff]
    %v266 = vld [vmem:[#allocation9 + $0x20] sm:$0xff]
    %v267 = vld [vmem:[#allocation9 + $0x28] sm:$0xff]
    %v268 = vld [vmem:[#allocation9 + $0x30] sm:$0xff]
    %v269 = vld [vmem:[#allocation9 + $0x38] sm:$0xff]
    %v270 = vld [vmem:[#allocation9 + $0x40] sm:$0xff]
    %v271 = vld [vmem:[#allocation9 + $0x48] sm:$0xff]
    %v272 = vld [vmem:[#allocation9 + $0x50] sm:$0xff]
    %v273 = vld [vmem:[#allocation9 + $0x58] sm:$0xff]
    %v274 = vld [vmem:[#allocation9 + $0x60] sm:$0xff]
    %v275 = vld [vmem:[#allocation9 + $0x68] sm:$0xff]
    %v276 = vld [vmem:[#allocation9 + $0x70] sm:$0xff]
    %v277 = vld [vmem:[#allocation9 + $0x78] sm:$0xff]
    %v278 = vld [vmem:[#allocation9 + $0x80] sm:$0xff]
    %v279 = vld [vmem:[#allocation9 + $0x88] sm:$0xff]
    %v280 = vld [vmem:[#allocation9 + $0x90] sm:$0xff]
    %v281 = vld [vmem:[#allocation9 + $0x98] sm:$0xff]
    %v282 = vld [vmem:[#allocation9 + $0xa0] sm:$0xff]
    %v283 = vld [vmem:[#allocation9 + $0xa8] sm:$0xff]
    %v284 = vld [vmem:[#allocation9 + $0xb0] sm:$0xff]
    %v285 = vld [vmem:[#allocation9 + $0xb8] sm:$0xff]
    %v286 = vld [vmem:[#allocation9 + $0xc0] sm:$0xff]
    %v287 = vld [vmem:[#allocation9 + $0xc8] sm:$0xff]
    %v288 = vld [vmem:[#allocation9 + $0xd0] sm:$0xff]
    %v289 = vld [vmem:[#allocation9 + $0xd8] sm:$0xff]
    %v290 = vld [vmem:[#allocation9 + $0xe0] sm:$0xff]
    %v291 = vld [vmem:[#allocation9 + $0xe8] sm:$0xff]
    %v292 = vld [vmem:[#allocation9 + $0xf0] sm:$0xff]
    %v293 = vld [vmem:[#allocation9 + $0xf8] sm:$0xff]
    %v294 = vld [vmem:[%s3] sm:$0x3]
    %v296 = vlaneseq
    %v297 = vshrl.u32 %v296, 7
    %v298 = vsub.s32 0, %v297
    %v299 = vrot.slane %v294, %v298
    %v300 = vlaneseq
    %v301 = vshrl.u32 %v300, 7
    %v302 = vsub.s32 1, %v301
    %v303 = vrot.slane %v294, %v302
    %v338 = vunpack.c.l.b16 %v262
    %v339 = vunpack.c.h.b16 %v262
    %v340 = vunpack.c.l.b16 %v263
    %v341 = vunpack.c.h.b16 %v263
    %v342 = vunpack.c.l.b16 %v264
    %v343 = vunpack.c.h.b16 %v264
    %v344 = vunpack.c.l.b16 %v265
    %v345 = vunpack.c.h.b16 %v265
    %v346 = vunpack.c.l.b16 %v266
    %v347 = vunpack.c.h.b16 %v266
    %v348 = vunpack.c.l.b16 %v267
    %v349 = vunpack.c.h.b16 %v267
    %v350 = vunpack.c.l.b16 %v268
    %v351 = vunpack.c.h.b16 %v268
    %v352 = vunpack.c.l.b16 %v269
    %v353 = vunpack.c.h.b16 %v269
    %v354 = vunpack.c.l.b16 %v270
    %v355 = vunpack.c.h.b16 %v270
    %v356 = vunpack.c.l.b16 %v271
    %v357 = vunpack.c.h.b16 %v271
    %v358 = vunpack.c.l.b16 %v272
    %v359 = vunpack.c.h.b16 %v272
    %v360 = vunpack.c.l.b16 %v273
    %v361 = vunpack.c.h.b16 %v273
    %v362 = vunpack.c.l.b16 %v274
    %v363 = vunpack.c.h.b16 %v274
    %v364 = vunpack.c.l.b16 %v275
    %v365 = vunpack.c.h.b16 %v275
    %v366 = vunpack.c.l.b16 %v276
    %v367 = vunpack.c.h.b16 %v276
    %v368 = vunpack.c.l.b16 %v277
    %v369 = vunpack.c.h.b16 %v277
    %v370 = vunpack.c.l.b16 %v278
    %v371 = vunpack.c.h.b16 %v278
    %v372 = vunpack.c.l.b16 %v279
    %v373 = vunpack.c.h.b16 %v279
    %v374 = vunpack.c.l.b16 %v280
    %v375 = vunpack.c.h.b16 %v280
    %v376 = vunpack.c.l.b16 %v281
    %v377 = vunpack.c.h.b16 %v281
    %v378 = vunpack.c.l.b16 %v282
    %v379 = vunpack.c.h.b16 %v282
    %v380 = vunpack.c.l.b16 %v283
    %v381 = vunpack.c.h.b16 %v283
    %v382 = vunpack.c.l.b16 %v284
    %v383 = vunpack.c.h.b16 %v284
    %v384 = vunpack.c.l.b16 %v285
    %v385 = vunpack.c.h.b16 %v285
    %v386 = vunpack.c.l.b16 %v286
    %v387 = vunpack.c.h.b16 %v286
    %v388 = vunpack.c.l.b16 %v287
    %v389 = vunpack.c.h.b16 %v287
    %v390 = vunpack.c.l.b16 %v288
    %v391 = vunpack.c.h.b16 %v288
    %v392 = vunpack.c.l.b16 %v289
    %v393 = vunpack.c.h.b16 %v289
    %v394 = vunpack.c.l.b16 %v290
    %v395 = vunpack.c.h.b16 %v290
    %v396 = vunpack.c.l.b16 %v291
    %v397 = vunpack.c.h.b16 %v291
    %v398 = vunpack.c.l.b16 %v292
    %v399 = vunpack.c.h.b16 %v292
    %v400 = vunpack.c.l.b16 %v293
    %v401 = vunpack.c.h.b16 %v293
    %v402 = vpack.c.b16 %v340, %v338
    %v403 = vpack.c.b16 %v341, %v339
    %v404 = vpack.c.b16 %v344, %v342
    %v405 = vpack.c.b16 %v345, %v343
    %v406 = vpack.c.b16 %v348, %v346
    %v407 = vpack.c.b16 %v349, %v347
    %v408 = vpack.c.b16 %v352, %v350
    %v409 = vpack.c.b16 %v353, %v351
    %v410 = vpack.c.b16 %v356, %v354
    %v411 = vpack.c.b16 %v357, %v355
    %v412 = vpack.c.b16 %v360, %v358
    %v413 = vpack.c.b16 %v361, %v359
    %v414 = vpack.c.b16 %v364, %v362
    %v415 = vpack.c.b16 %v365, %v363
    %v416 = vpack.c.b16 %v368, %v366
    %v417 = vpack.c.b16 %v369, %v367
    %v418 = vpack.c.b16 %v372, %v370
    %v419 = vpack.c.b16 %v373, %v371
    %v420 = vpack.c.b16 %v376, %v374
    %v421 = vpack.c.b16 %v377, %v375
    %v422 = vpack.c.b16 %v380, %v378
    %v423 = vpack.c.b16 %v381, %v379
    %v424 = vpack.c.b16 %v384, %v382
    %v425 = vpack.c.b16 %v385, %v383
    %v426 = vpack.c.b16 %v388, %v386
    %v427 = vpack.c.b16 %v389, %v387
    %v428 = vpack.c.b16 %v392, %v390
    %v429 = vpack.c.b16 %v393, %v391
    %v430 = vpack.c.b16 %v396, %v394
    %v431 = vpack.c.b16 %v397, %v395
    %v432 = vpack.c.b16 %v400, %v398
    %v433 = vpack.c.b16 %v401, %v399
    %466 = vmatprep.subr.bf16.mxu0 %v403
    %467 = vmatpush1.bf16.msra.mxu0 %v402
    %468 = vmatprep.subr.bf16.mxu0 %v405
    %469 = vmatpush1.bf16.msra.mxu0 %v404
    %470 = vmatprep.subr.bf16.mxu0 %v407
    %471 = vmatpush1.bf16.msra.mxu0 %v406
    %472 = vmatprep.subr.bf16.mxu0 %v409
    %473 = vmatpush1.bf16.msra.mxu0 %v408
    %474 = vmatprep.subr.bf16.mxu0 %v411
    %475 = vmatpush1.bf16.msra.mxu0 %v410
    %476 = vmatprep.subr.bf16.mxu0 %v413
    %477 = vmatpush1.bf16.msra.mxu0 %v412
    %478 = vmatprep.subr.bf16.mxu0 %v415
    %479 = vmatpush1.bf16.msra.mxu0 %v414
    %480 = vmatprep.subr.bf16.mxu0 %v417
    %481 = vmatpush1.bf16.msra.mxu0 %v416
    %482 = vmatprep.subr.bf16.mxu0 %v419
    %483 = vmatpush1.bf16.msra.mxu0 %v418
    %484 = vmatprep.subr.bf16.mxu0 %v421
    %485 = vmatpush1.bf16.msra.mxu0 %v420
    %486 = vmatprep.subr.bf16.mxu0 %v423
    %487 = vmatpush1.bf16.msra.mxu0 %v422
    %488 = vmatprep.subr.bf16.mxu0 %v425
    %489 = vmatpush1.bf16.msra.mxu0 %v424
    %490 = vmatprep.subr.bf16.mxu0 %v427
    %491 = vmatpush1.bf16.msra.mxu0 %v426
    %492 = vmatprep.subr.bf16.mxu0 %v429
    %493 = vmatpush1.bf16.msra.mxu0 %v428
    %494 = vmatprep.subr.bf16.mxu0 %v431
    %495 = vmatpush1.bf16.msra.mxu0 %v430
    %496 = vmatprep.subr.bf16.mxu0 %v433
    %497 = vmatpush1.bf16.msra.mxu0 %v432
    %498 = vmatprep.mubr.bf16.mxu0 %v261
    %499 = vmatmul.mubr.bf16.gmra.mrb[0].mxu0 %v260
    %v500 = vpop.f32.mrb[0].mxu0
    %v501 = vadd.f32 %v299, %v500
    %v502 = vpop.f32.mrb[0].mxu0
    %v503 = vadd.f32 %v303, %v502
    %v504 = vpop.f32.mrb[0].mxu0
    %v505 = vadd.f32 %v299, %v504
    %v506 = vpop.f32.mrb[0].mxu0
    %v507 = vadd.f32 %v303, %v506
    %508 = vdwg.mxu0
    %v509 = vmax.f32 %v501, 0.0
    %v510 = vmax.f32 %v503, 0.0
    %v511 = vmax.f32 %v505, 0.0
    %v512 = vmax.f32 %v507, 0.0
    %v513 = vpack.c.bf16 %v511, %v509
    %v514 = vpack.c.bf16 %v512, %v510
    %v515 = vld [vmem:[#allocation11] sm:$0xf]
    %v516 = vld [vmem:[#allocation11 + $0x4] sm:$0xf]
    %v517 = vld [vmem:[#allocation11 + $0x8] sm:$0xf]
    %v518 = vld [vmem:[#allocation11 + $0xc] sm:$0xf]
    %v519 = vld [vmem:[#allocation11 + $0x10] sm:$0xf]
    %v520 = vld [vmem:[#allocation11 + $0x14] sm:$0xf]
    %v521 = vld [vmem:[#allocation11 + $0x18] sm:$0xf]
    %v522 = vld [vmem:[#allocation11 + $0x1c] sm:$0xf]
    %v523 = vld [vmem:[#allocation11 + $0x20] sm:$0xf]
    %v524 = vld [vmem:[#allocation11 + $0x24] sm:$0xf]
    %v525 = vld [vmem:[#allocation11 + $0x28] sm:$0xf]
    %v526 = vld [vmem:[#allocation11 + $0x2c] sm:$0xf]
    %v527 = vld [vmem:[#allocation11 + $0x30] sm:$0xf]
    %v528 = vld [vmem:[#allocation11 + $0x34] sm:$0xf]
    %v529 = vld [vmem:[#allocation11 + $0x38] sm:$0xf]
    %v530 = vld [vmem:[#allocation11 + $0x3c] sm:$0xf]
    %v531 = vld [vmem:[#allocation11 + $0x40] sm:$0xf]
    %v532 = vld [vmem:[#allocation11 + $0x44] sm:$0xf]
    %v533 = vld [vmem:[#allocation11 + $0x48] sm:$0xf]
    %v534 = vld [vmem:[#allocation11 + $0x4c] sm:$0xf]
    %v535 = vld [vmem:[#allocation11 + $0x50] sm:$0xf]
    %v536 = vld [vmem:[#allocation11 + $0x54] sm:$0xf]
    %v537 = vld [vmem:[#allocation11 + $0x58] sm:$0xf]
    %v538 = vld [vmem:[#allocation11 + $0x5c] sm:$0xf]
    %v539 = vld [vmem:[#allocation11 + $0x60] sm:$0xf]
    %v540 = vld [vmem:[#allocation11 + $0x64] sm:$0xf]
    %v541 = vld [vmem:[#allocation11 + $0x68] sm:$0xf]
    %v542 = vld [vmem:[#allocation11 + $0x6c] sm:$0xf]
    %v543 = vld [vmem:[#allocation11 + $0x70] sm:$0xf]
    %v544 = vld [vmem:[#allocation11 + $0x74] sm:$0xf]
    %v545 = vld [vmem:[#allocation11 + $0x78] sm:$0xf]
    %v546 = vld [vmem:[#allocation11 + $0x7c] sm:$0xf]
    %v547 = vld [vmem:[%s5] sm:$0x1]
    %v549 = vlaneseq
    %v550 = vshrl.u32 %v549, 7
    %v551 = vsub.s32 0, %v550
    %v552 = vrot.slane %v547, %v551
    %v586 = vunpack.c.l.b16 %v515
    %v587 = vunpack.c.l.b16 %v516
    %v588 = vunpack.c.l.b16 %v517
    %v589 = vunpack.c.l.b16 %v518
    %v590 = vunpack.c.l.b16 %v519
    %v591 = vunpack.c.l.b16 %v520
    %v592 = vunpack.c.l.b16 %v521
    %v593 = vunpack.c.l.b16 %v522
    %v594 = vunpack.c.l.b16 %v523
    %v595 = vunpack.c.l.b16 %v524
    %v596 = vunpack.c.l.b16 %v525
    %v597 = vunpack.c.l.b16 %v526
    %v598 = vunpack.c.l.b16 %v527
    %v599 = vunpack.c.l.b16 %v528
    %v600 = vunpack.c.l.b16 %v529
    %v601 = vunpack.c.l.b16 %v530
    %v602 = vunpack.c.l.b16 %v531
    %v603 = vunpack.c.l.b16 %v532
    %v604 = vunpack.c.l.b16 %v533
    %v605 = vunpack.c.l.b16 %v534
    %v606 = vunpack.c.l.b16 %v535
    %v607 = vunpack.c.l.b16 %v536
    %v608 = vunpack.c.l.b16 %v537
    %v609 = vunpack.c.l.b16 %v538
    %v610 = vunpack.c.l.b16 %v539
    %v611 = vunpack.c.l.b16 %v540
    %v612 = vunpack.c.l.b16 %v541
    %v613 = vunpack.c.l.b16 %v542
    %v614 = vunpack.c.l.b16 %v543
    %v615 = vunpack.c.l.b16 %v544
    %v616 = vunpack.c.l.b16 %v545
    %v617 = vunpack.c.l.b16 %v546
    %v618 = vpack.c.b16 %v587, %v586
    %v619 = vpack.c.b16 %v589, %v588
    %v620 = vpack.c.b16 %v591, %v590
    %v621 = vpack.c.b16 %v593, %v592
    %v622 = vpack.c.b16 %v595, %v594
    %v623 = vpack.c.b16 %v597, %v596
    %v624 = vpack.c.b16 %v599, %v598
    %v625 = vpack.c.b16 %v601, %v600
    %v626 = vpack.c.b16 %v603, %v602
    %v627 = vpack.c.b16 %v605, %v604
    %v628 = vpack.c.b16 %v607, %v606
    %v629 = vpack.c.b16 %v609, %v608
    %v630 = vpack.c.b16 %v611, %v610
    %v631 = vpack.c.b16 %v613, %v612
    %v632 = vpack.c.b16 %v615, %v614
    %v633 = vpack.c.b16 %v617, %v616
    %650 = vmatprep.subr.bf16.mxu0 0
    %651 = vmatpush1.bf16.msra.mxu0 %v618
    %652 = vmatprep.subr.bf16.mxu0 0
    %653 = vmatpush1.bf16.msra.mxu0 %v619
    %654 = vmatprep.subr.bf16.mxu0 0
    %655 = vmatpush1.bf16.msra.mxu0 %v620
    %656 = vmatprep.subr.bf16.mxu0 0
    %657 = vmatpush1.bf16.msra.mxu0 %v621
    %658 = vmatprep.subr.bf16.mxu0 0
    %659 = vmatpush1.bf16.msra.mxu0 %v622
    %660 = vmatprep.subr.bf16.mxu0 0
    %661 = vmatpush1.bf16.msra.mxu0 %v623
    %662 = vmatprep.subr.bf16.mxu0 0
    %663 = vmatpush1.bf16.msra.mxu0 %v624
    %664 = vmatprep.subr.bf16.mxu0 0
    %665 = vmatpush1.bf16.msra.mxu0 %v625
    %666 = vmatprep.subr.bf16.mxu0 0
    %667 = vmatpush1.bf16.msra.mxu0 %v626
    %668 = vmatprep.subr.bf16.mxu0 0
    %669 = vmatpush1.bf16.msra.mxu0 %v627
    %670 = vmatprep.subr.bf16.mxu0 0
    %671 = vmatpush1.bf16.msra.mxu0 %v628
    %672 = vmatprep.subr.bf16.mxu0 0
    %673 = vmatpush1.bf16.msra.mxu0 %v629
    %674 = vmatprep.subr.bf16.mxu0 0
    %675 = vmatpush1.bf16.msra.mxu0 %v630
    %676 = vmatprep.subr.bf16.mxu0 0
    %677 = vmatpush1.bf16.msra.mxu0 %v631
    %678 = vmatprep.subr.bf16.mxu0 0
    %679 = vmatpush1.bf16.msra.mxu0 %v632
    %680 = vmatprep.subr.bf16.mxu0 0
    %681 = vmatpush1.bf16.msra.mxu0 %v633
    %682 = vmatprep.mubr.bf16.mxu0 %v514
    %683 = vmatmul.mubr.bf16.gmra.mrb[0].mxu0 %v513
    %v684 = vpop.f32.mrb[0].mxu0
    %v685 = vadd.f32 %v552, %v684
    %v686 = vpop.f32.mrb[0].mxu0
    %v687 = vpop.f32.mrb[0].mxu0
    %v688 = vadd.f32 %v552, %v687
    %v689 = vpop.f32.mrb[0].mxu0
    %690 = vdwg.mxu0
    %v691 = vpack.c.bf16 %v688, %v685
    %v693 = vunpack.c.l.b16 %v691
    %v694 = vunpack.c.h.b16 %v691
    %v695 = vpack.c.b16 %v693, %v693
    %v696 = vpack.c.b16 %v694, %v694
    %699 = vst [vmem:[%s8] sm:$0xf] %v695
    %700 = vst [vmem:[%s8 + $0x4] sm:$0xf] %v696
    // Predicated region
    $region42: #{qnetwork_forward.2} parent=1 // pred_check
      _
    $region43: #{qnetwork_forward.2} parent=1 // pred_check_branch
      %702 = sbr.rel (0) target = $region45
    $region44: #{qnetwork_forward.2} parent=1 // pred_region
      _
    $region45: #{qnetwork_forward.2} parent=1 // pred_fallthru
      _
    // Predicated region
    $region46: #{qnetwork_forward.2} parent=1 // pred_check
      _
    $region47: #{qnetwork_forward.2} parent=1 // pred_check_branch
      %704 = sbr.rel (0) target = $region49
    $region48: #{qnetwork_forward.2} parent=1 // pred_region
      _
    $region49: #{qnetwork_forward.2} parent=1 // pred_fallthru
      _
    %705 = vsyncpa [#allocation8], 1
    %706 = vsyncpa [#allocation10], 1

</llo_original>
